<compile_context>
chip_gen: v7x
topology: tpu7x:2x2x1
jax: 0.10.0
libtpu: 0.0.40
codegen_flags: <defaults>
</compile_context>

<pallas_src>
import numpy as np

import jax
import jax.numpy as jnp
from jax.experimental import pallas as pl
from jax.experimental.pallas import tpu as pltpu


def _round_up(x: int, m: int) -> int:
    return ((x + m - 1) // m) * m


def _round_down(x: int, m: int) -> int:
    return (x // m) * m


def create_dft_matrix(P: int) -> jnp.ndarray:
    """Real 2P x 2P matrix W (nn.Linear weight layout: out_features x in_features)
    implementing the size-P complex DFT on interleaved [Re, Im, ...] vectors.

      X_k = sum_n x_n * exp(-2*pi*i*k*n/P)
      Re(X_k) = sum_n  Re(x_n) cos(t) + Im(x_n) sin(t)
      Im(X_k) = sum_n -Re(x_n) sin(t) + Im(x_n) cos(t),   t = 2*pi*k*n/P

    Built on host in int64/float64: (k*n) mod P is exact for any practical P
    (no int32 overflow, no f32 angle degradation); cast to f32 once at the end.
    """
    k = np.arange(P, dtype=np.int64)[:, None]
    n = np.arange(P, dtype=np.int64)[None, :]
    kn_mod = np.mod(k * n, P).astype(np.float64)
    theta = (2.0 * np.pi / P) * kn_mod
    cos, sin = np.cos(theta), np.sin(theta)

    W = np.zeros((2 * P, 2 * P), dtype=np.float64)
    W[0::2, 0::2] = cos     # Re(X_k) <- Re(x_n)
    W[0::2, 1::2] = sin     # Re(X_k) <- Im(x_n)
    W[1::2, 0::2] = -sin    # Im(X_k) <- Re(x_n)
    W[1::2, 1::2] = cos     # Im(X_k) <- Im(x_n)
    return jnp.asarray(W, dtype=jnp.float32)


def _matmul_kernel(x_ref, wt_ref, o_ref):
    # One MXU matmul per block: (TM, K) @ (K, N) -> (TM, N).
    o_ref[...] = jnp.dot(
        x_ref[...], wt_ref[...], preferred_element_type=jnp.float32
    ).astype(o_ref.dtype)


def make_dft_linear(
    P: int,
    *,
    stream_budget_bytes: int = 8 << 20,        # double-buffered x+out budget
    max_row_tile: int = 2048,
    resident_weight_limit_bytes: int = 16 << 20,  # fits v5e/v6e/v7x comfortably
):
    """Builds the forward fn for DFTLinearModule(P).  All weight-side work
    (transpose, lane-density packing / output-column padding) happens once here,
    outside the per-call path."""
    F = 2 * P
    W = create_dft_matrix(P)
    wt = W.T  # (in_features, out_features); a module constant.

    if F < 128 and 128 % F == 0:
        # Fold G batch rows into one 128-lane row; block-diagonal weight keeps
        # the math identical while vld/vst/MXU columns are fully dense.
        G = 128 // F
        wt_packed = jnp.kron(jnp.eye(G, dtype=wt.dtype), wt)  # (128, 128)
        FP_in = FP_out = 128
    else:
        G = 1
        FP_in = F
        FP_out = _round_up(F, 128)
        if FP_out != F:
            # Zero output columns -> lane-dense stores; sliced off post-call.
            wt_packed = jnp.pad(wt, ((0, 0), (0, FP_out - F)))
        else:
            wt_packed = wt

    weight_bytes = FP_in * FP_out * 4
    resident = weight_bytes <= resident_weight_limit_bytes

    def _choose_row_tile(rows: int) -> int:
        if rows <= 8:
            return rows  # block equals full dim; nothing to split
        per_row = 2 * 4 * (FP_in + FP_out)  # double-buffered f32 x + out, per row
        tm = max(8, _round_down(stream_budget_bytes // per_row, 8))
        tm = min(tm, max_row_tile)
        if rows >= 16:
            # Guarantee >= 2 grid steps so the "parallel" axis can shard across
            # v7x's two TensorCores (neutral on v5e/v6e).
            tm = min(tm, _round_up(pl.cdiv(rows, 2), 8))
        return max(8, min(tm, _round_down(rows, 8)))

    @jax.jit
    def forward(x: jnp.ndarray) -> jnp.ndarray:
        B, Fin = x.shape
        assert Fin == F, f"expected last dim {F}, got {Fin}"

        # Lane packing (G > 1): tiny pad only to a multiple of G if needed
        # (<= G-1 rows); NOT to a multiple of the batch tile.
        if G > 1:
            rows = pl.cdiv(B, G)
            B_g = rows * G
            xp = x
            if B_g != B:
                xp = jnp.pad(xp, ((0, B_g - B), (0, 0)))
            xp = xp.reshape(rows, FP_in)  # lane-dense layout (contiguous view)
        else:
            rows = B
            xp = x

        # True work (not the kron/zero-padded figure) — advisory for XLA.
        cost = pl.CostEstimate(
            flops=2 * B * F * F,
            transcendentals=0,
            bytes_accessed=4 * (2 * B * F + F * F),
        )

        if resident:
            # Weight resident in VMEM (single-buffered), batch tiles streamed.
            TM = _choose_row_tile(rows)
            grid = (pl.cdiv(rows, TM),)
            stream_bytes = 2 * TM * (FP_in + FP_out) * 4
            vmem_limit = int(
                min(48 << 20, max(16 << 20, (weight_bytes + stream_bytes) * 14 // 10))
            )
            out = pl.pallas_call(
                _matmul_kernel,
                out_shape=jax.ShapeDtypeStruct((rows, FP_out), x.dtype),
                grid_spec=pltpu.PrefetchScalarGridSpec(
                    num_scalar_prefetch=0,
                    grid=grid,
                    in_specs=[
                        # Streamed, double-buffered batch tile.
                        pl.BlockSpec((TM, FP_in), lambda i: (i, 0)),
                        # Resident weight: constant block, single buffer.
                        pl.BlockSpec((FP_in, FP_out), lambda i: (0, 0),
                                     pipeline_mode=pl.Buffered(1)),
                    ],
                    out_specs=pl.BlockSpec((TM, FP_out), lambda i: (i, 0)),
                ),
                compiler_params=pltpu.CompilerParams(
                    dimension_semantics=("parallel",),
                    vmem_limit_bytes=vmem_limit,
                ),
                cost_estimate=cost,
            )(xp, wt_packed)
        else:
            # Large-FP path (weight cannot be resident, e.g. FP > 2048 which is
            # already too big for v7x's 64 MiB/TC when double-buffered):
            # split the output columns; weight blocks streamed per (i, j).
            TM = rows if rows <= 8 else min(256, _round_down(rows, 8))
            TN = max(t for t in (512, 256, 128) if FP_out % t == 0)
            grid = (pl.cdiv(rows, TM), FP_out // TN)
            footprint = 2 * 4 * (TM * FP_in + FP_in * TN + TM * TN)
            vmem_limit = int(min(56 << 20, max(16 << 20, footprint * 14 // 10)))
            out = pl.pallas_call(
                _matmul_kernel,
                out_shape=jax.ShapeDtypeStruct((rows, FP_out), x.dtype),
                grid_spec=pltpu.PrefetchScalarGridSpec(
                    num_scalar_prefetch=0,
                    grid=grid,
                    in_specs=[
                        pl.BlockSpec((TM, FP_in), lambda i, j: (i, 0)),
                        pl.BlockSpec((FP_in, TN), lambda i, j: (0, j)),
                    ],
                    out_specs=pl.BlockSpec((TM, TN), lambda i, j: (i, j)),
                ),
                compiler_params=pltpu.CompilerParams(
                    dimension_semantics=("parallel", "parallel"),
                    vmem_limit_bytes=vmem_limit,
                ),
                cost_estimate=cost,
            )(xp, wt_packed)

        if G > 1:
            return out.reshape(rows * G, F)[:B]
        if FP_out != F:
            return out[:, :F]
        return out

    return forward


if __name__ == "__main__":
    P = 16              # complex channels -> features = 2*P = 32
    batch = 8

    key = jax.random.PRNGKey(0)
    x = jax.random.normal(key, (batch, 2 * P), dtype=jnp.float32)

    dft_forward = make_dft_linear(P)

    y = dft_forward(x)
    y = jax.block_until_ready(y)

    # Reference: plain-JAX nn.Linear forward with the fixed DFT weight.
    W = create_dft_matrix(P)
    y_ref = x @ W.T

    assert y.shape == x.shape
    assert jnp.allclose(y, y_ref, atol=1e-4, rtol=1e-4), (
        f"max abs err {jnp.max(jnp.abs(y - y_ref))}")

    print("KERNEL_OK")
</pallas_src>

<mosaic_0001>
module attributes {stable_mosaic.version = 11 : i64} {
  func.func @_matmul_kernel(%arg0: i32, %arg1: memref<2x128xf32, #tpu.memory_space<vmem>>, %arg2: memref<128x128xf32, #tpu.memory_space<vmem>>, %arg3: memref<2x128xf32, #tpu.memory_space<vmem>>) attributes {dimension_semantics = [#tpu.dimension_semantics<parallel>], iteration_bounds = array<i64: 1>, scalar_prefetch = 0 : i64, scratch_operands = 0 : i64, tpu.core_type = #tpu.core_type<tc>, window_params = [{transform_indices = @transform_0, window_bounds = array<i64: 2, 128>}, {pipeline_mode = #tpu.pipeline_mode<synchronous>, transform_indices = @transform_1, window_bounds = array<i64: 128, 128>}, {transform_indices = @transform_2, window_bounds = array<i64: 2, 128>}]} {
    %c0 = arith.constant 0 : index
    %c0_0 = arith.constant 0 : index
    %0 = vector.load %arg1[%c0, %c0_0] : memref<2x128xf32, #tpu.memory_space<vmem>>, vector<2x128xf32>
    %c0_1 = arith.constant 0 : index
    %c0_2 = arith.constant 0 : index
    %1 = vector.load %arg2[%c0_1, %c0_2] : memref<128x128xf32, #tpu.memory_space<vmem>>, vector<128x128xf32>
    %cst = arith.constant dense<0.000000e+00> : vector<2x128xf32>
    %2 = tpu.matmul %0, %1, %cst {dimension_numbers = #tpu.dot_dimension_numbers<[1], [0], [0], [1], [0, 0, 1, 1], [], []>} : vector<2x128xf32>, vector<128x128xf32>, vector<2x128xf32> -> vector<2x128xf32>
    %c0_3 = arith.constant 0 : index
    %c0_4 = arith.constant 0 : index
    %3 = vector.load %arg3[%c0_3, %c0_4] : memref<2x128xf32, #tpu.memory_space<vmem>>, vector<2x128xf32>
    tpu.vector_store %arg3[%c0_3, %c0_4], %2 {strides = array<i32>} : memref<2x128xf32, #tpu.memory_space<vmem>>, vector<2x128xf32>,
    return
  }
  func.func @transform_0(%arg0: i32) -> (i32, i32) {
    %c0_i32 = arith.constant 0 : i32
    %c0_i32_0 = arith.constant 0 : i32
    return %arg0, %c0_i32 : i32, i32
  }
  func.func @transform_1(%arg0: i32) -> (i32, i32) {
    %c0_i32 = arith.constant 0 : i32
    %c0_i32_0 = arith.constant 0 : i32
    %c0_i32_1 = arith.constant 0 : i32
    return %c0_i32, %c0_i32_0 : i32, i32
  }
  func.func @transform_2(%arg0: i32) -> (i32, i32) {
    %c0_i32 = arith.constant 0 : i32
    %c0_i32_0 = arith.constant 0 : i32
    return %arg0, %c0_i32 : i32, i32
  }
}

</mosaic_0001>

<llo_original>
// kernel: forward.1
$region0: #{forward.1}
  #allocation0 [shape = 'u32[]', space=smem, size = 0x4, offset = 0x4, fixed_abs, tag = 'smem constant byte address 0x4 - core index']
  #allocation1 [shape = 'u32[144,128]{1,0:T(1,128)}', space=vmem, size = 0x12000, scoped, tag = 'internal scratch']
  %s0 = inlined_call_operand.vmem [shape: f32[2,128], index: 0, kind: input, shape index: {}]
  %s1 = inlined_call_operand.hbm [shape: f32[128,128], index: 1, kind: input, shape index: {}]
  %s2 = inlined_call_operand.vmem [shape: f32[2,128], index: 2, kind: output, shape index: {}]
  %s3 = sld [smem:[#allocation0]]
  $region22: #{forward.1} parent=0
    _
  %s5 = ssub.s32 1, %s3
  %s6 = scalar_select 0, %s5, %s3
  $region1: #{forward.1} parent=0
    #allocation2 [shape = 'u8[65536]{0}', space=vmem, size = 0x10000, scoped, tag = 'input window, operand 1, single buffered']
    #allocation3 [shape = 's32[1]{0}', space=sflag, size = 0x4, scoped, tag = 'scoped memory for forward.1']
    %7 = vsyncpa [#allocation3], 0
    // Predicated region
    $region2: #{forward.1} parent=1 // pred_check
      _
    $region3: #{forward.1} parent=1 // pred_check_branch
      %9 = sbr.rel (0) target = $region5
    $region4: #{forward.1} parent=1 // pred_region
      _
    $region5: #{forward.1} parent=1 // pred_fallthru
      _
    // Predicated region
    $region6: #{forward.1} parent=1 // pred_check
      _
    $region7: #{forward.1} parent=1 // pred_check_branch
      %11 = sbr.rel (0) target = $region9
    $region8: #{forward.1} parent=1 // pred_region
      %s13 = ssub.s32 2048, 2048
      %14 = vsyncadd [#allocation3], %s13
      %s15 = sshll.u32 [#allocation2], 4
      %s16 = int_to_ptr.vmem [resolvable:$true] %s15
      %21 = dma.hbm_to_vmem [thread:$0]  %s1, 2048, %s16, [#allocation3], 128, 128, 8
    $region9: #{forward.1} parent=1 // pred_fallthru
      _
    // Predicated region
    $region10: #{forward.1} parent=1 // pred_check
      _
    $region11: #{forward.1} parent=1 // pred_check_branch
      %23 = sbr.rel (0) target = $region13
    $region12: #{forward.1} parent=1 // pred_region
      %24 = dma.done [#allocation3], 2048
    $region13: #{forward.1} parent=1 // pred_fallthru
      _
    %v25 = vld [vmem:[%s0] sm:$0x3]
    %v26 = vld [vmem:[#allocation2] sm:$0xff]
    %v27 = vld [vmem:[#allocation2 + $0x8] sm:$0xff]
    %v28 = vld [vmem:[#allocation2 + $0x10] sm:$0xff]
    %v29 = vld [vmem:[#allocation2 + $0x18] sm:$0xff]
    %v30 = vld [vmem:[#allocation2 + $0x20] sm:$0xff]
    %v31 = vld [vmem:[#allocation2 + $0x28] sm:$0xff]
    %v32 = vld [vmem:[#allocation2 + $0x30] sm:$0xff]
    %v33 = vld [vmem:[#allocation2 + $0x38] sm:$0xff]
    %v34 = vld [vmem:[#allocation2 + $0x40] sm:$0xff]
    %v35 = vld [vmem:[#allocation2 + $0x48] sm:$0xff]
    %v36 = vld [vmem:[#allocation2 + $0x50] sm:$0xff]
    %v37 = vld [vmem:[#allocation2 + $0x58] sm:$0xff]
    %v38 = vld [vmem:[#allocation2 + $0x60] sm:$0xff]
    %v39 = vld [vmem:[#allocation2 + $0x68] sm:$0xff]
    %v40 = vld [vmem:[#allocation2 + $0x70] sm:$0xff]
    %v41 = vld [vmem:[#allocation2 + $0x78] sm:$0xff]
    %42 = vmatprep.subr.mxu0 0.0
    %43 = vmatpush1.msra.mxu0 %v26
    %44 = vmatprep.subr.mxu0 0.0
    %45 = vmatpush1.msra.mxu0 %v27
    %46 = vmatprep.subr.mxu0 0.0
    %47 = vmatpush1.msra.mxu0 %v28
    %48 = vmatprep.subr.mxu0 0.0
    %49 = vmatpush1.msra.mxu0 %v29
    %50 = vmatprep.subr.mxu0 0.0
    %51 = vmatpush1.msra.mxu0 %v30
    %52 = vmatprep.subr.mxu0 0.0
    %53 = vmatpush1.msra.mxu0 %v31
    %54 = vmatprep.subr.mxu0 0.0
    %55 = vmatpush1.msra.mxu0 %v32
    %56 = vmatprep.subr.mxu0 0.0
    %57 = vmatpush1.msra.mxu0 %v33
    %58 = vmatprep.subr.mxu0 0.0
    %59 = vmatpush1.msra.mxu0 %v34
    %60 = vmatprep.subr.mxu0 0.0
    %61 = vmatpush1.msra.mxu0 %v35
    %62 = vmatprep.subr.mxu0 0.0
    %63 = vmatpush1.msra.mxu0 %v36
    %64 = vmatprep.subr.mxu0 0.0
    %65 = vmatpush1.msra.mxu0 %v37
    %66 = vmatprep.subr.mxu0 0.0
    %67 = vmatpush1.msra.mxu0 %v38
    %68 = vmatprep.subr.mxu0 0.0
    %69 = vmatpush1.msra.mxu0 %v39
    %70 = vmatprep.subr.mxu0 0.0
    %71 = vmatpush1.msra.mxu0 %v40
    %72 = vmatprep.subr.mxu0 0.0
    %73 = vmatpush1.msra.mxu0 %v41
    %74 = vmatprep.subr.mxu0 0.0
    %75 = vmatpush1.msra.mxu0 0.0
    %76 = vmatprep.subr.mxu0 0.0
    %77 = vmatpush1.msra.mxu0 0.0
    %78 = vmatprep.subr.mxu0 0.0
    %79 = vmatpush1.msra.mxu0 0.0
    %80 = vmatprep.subr.mxu0 0.0
    %81 = vmatpush1.msra.mxu0 0.0
    %82 = vmatprep.subr.mxu0 0.0
    %83 = vmatpush1.msra.mxu0 0.0
    %84 = vmatprep.subr.mxu0 0.0
    %85 = vmatpush1.msra.mxu0 0.0
    %86 = vmatprep.subr.mxu0 0.0
    %87 = vmatpush1.msra.mxu0 0.0
    %88 = vmatprep.subr.mxu0 0.0
    %89 = vmatpush1.msra.mxu0 0.0
    %90 = vmatprep.subr.mxu0 0.0
    %91 = vmatpush1.msra.mxu0 0.0
    %92 = vmatprep.subr.mxu0 0.0
    %93 = vmatpush1.msra.mxu0 0.0
    %94 = vmatprep.subr.mxu0 0.0
    %95 = vmatpush1.msra.mxu0 0.0
    %96 = vmatprep.subr.mxu0 0.0
    %97 = vmatpush1.msra.mxu0 0.0
    %98 = vmatprep.subr.mxu0 0.0
    %99 = vmatpush1.msra.mxu0 0.0
    %100 = vmatprep.subr.mxu0 0.0
    %101 = vmatpush1.msra.mxu0 0.0
    %102 = vmatprep.subr.mxu0 0.0
    %103 = vmatpush1.msra.mxu0 0.0
    %104 = vmatprep.subr.mxu0 0.0
    %105 = vmatpush1.msra.mxu0 0.0
    %106 = vmatprep.mubr.f32.mxu0 0.0
    %107 = vmatmul.mubr.f32.gmra.mrb[0].mxu0 %v25
    %v108 = vpop.f32.mrb[0].mxu0
    %v109 = vadd.f32 0.0, %v108
    %v110 = vpop.f32.mrb[0].mxu0
    %111 = vdwg.mxu0
    %112 = vst [vmem:[%s2] sm:$0x3] %v109
    // Predicated region
    $region14: #{forward.1} parent=1 // pred_check
      _
    $region15: #{forward.1} parent=1 // pred_check_branch
      %114 = sbr.rel (0) target = $region17
    $region16: #{forward.1} parent=1 // pred_region
      _
    $region17: #{forward.1} parent=1 // pred_fallthru
      _
    // Predicated region
    $region18: #{forward.1} parent=1 // pred_check
      _
    $region19: #{forward.1} parent=1 // pred_check_branch
      %116 = sbr.rel (0) target = $region21
    $region20: #{forward.1} parent=1 // pred_region
      _
    $region21: #{forward.1} parent=1 // pred_fallthru
      _
    %117 = vsyncpa [#allocation3], 1

</llo_original>
